<compile_context>
chip_gen: v7x
topology: tpu7x:2x2x1
jax: 0.10.0
libtpu: 0.0.40
codegen_flags: <defaults>
</compile_context>

<pallas_src>
import jax
import jax.numpy as jnp
from jax.experimental import pallas as pl
from jax.experimental.pallas import tpu as pltpu

_MiB = 1024 * 1024


def _cdiv(a: int, b: int) -> int:
    return -(-a // b)


def _round_up(a: int, b: int) -> int:
    return _cdiv(a, b) * b


def _tpu_caps():
    """Return (vmem_capacity_bytes, num_tensorcores, is_v7x); robust to missing introspection."""
    kind = ""
    try:
        kind = jax.devices()[0].device_kind.lower()
    except Exception:
        pass
    is_v7 = "v7" in kind
    vmem = None
    try:
        vmem = int(pltpu.get_tpu_info().vmem_capacity_bytes)
    except Exception:
        vmem = None
    if not vmem or vmem <= 0:
        # Unknown hardware -> conservative 64 MiB; v5e/v6e -> 128 MiB.
        vmem = 64 * _MiB if (is_v7 or not kind) else 128 * _MiB
    num_tc = 2 if is_v7 else 1
    return vmem, num_tc, is_v7


def adapter_kernel(x_ref, w1_ref, b1_ref, w2_ref, b2_ref, o_ref):
    """One (tm, Dp) tile of tokens through the bottleneck MLP + residual."""
    x = x_ref[...]                                    # (tm, Dp), caller dtype
    mxu_dt = w1_ref.dtype                             # bf16 by default (f32 if requested)
    # Down-projection on the MXU, f32 accumulation.
    h = jnp.dot(x.astype(mxu_dt), w1_ref[...], preferred_element_type=jnp.float32)
    # Bias + ReLU in f32 on the VPU (v5e has no bf16 VPU path).
    h = jnp.maximum(h + b1_ref[...], 0.0)
    # Up-projection on the MXU, f32 accumulation.
    y = jnp.dot(h.astype(mxu_dt), w2_ref[...], preferred_element_type=jnp.float32)
    y = y + b2_ref[...]
    # Residual add in f32, then one lane-dense store of the whole tile.
    o_ref[...] = (x.astype(jnp.float32) + y).astype(o_ref.dtype)


def prepare_adapter_params(w1, b1, w2, b2, *, mxu_dtype=jnp.bfloat16):
    """Cast + pad the adapter parameters ONCE (amortized over all forward calls).

    w1: (D, M) first Linear weight, input-major (PyTorch weight.T);  b1: (M,)
    w2: (M, D) second Linear weight, input-major;                    b2: (D,)
    mxu_dtype: MXU operand dtype. bf16 (default) halves weight bytes and uses the
      fast MXU path with f32 accumulation; pass jnp.float32 for exact f32 semantics.

    Returns (w1_p, b1_p, w2_p, b2_p) with shapes (Dp, Mp), (1, Mp), (Mp, Dp), (1, Dp)
    where Mp = round_up(M, 128) and Dp = D if D % 128 == 0 else round_up(D, 128).
    Zero padding keeps the math exact (padded columns/rows contribute 0).
    """
    D, M = w1.shape
    assert w2.shape == (M, D), "w2 must be (mid_dim, embed_dim) input-major"
    Dp = D if D % 128 == 0 else _round_up(D, 128)
    Mp = _round_up(M, 128)

    def pad2(a, r, c):
        pr, pc = r - a.shape[0], c - a.shape[1]
        return a if (pr == 0 and pc == 0) else jnp.pad(a, ((0, pr), (0, pc)))

    w1_p = pad2(jnp.asarray(w1).astype(mxu_dtype), Dp, Mp)
    b1_p = pad2(jnp.asarray(b1).reshape(1, M).astype(jnp.float32), 1, Mp)
    w2_p = pad2(jnp.asarray(w2).astype(mxu_dtype), Mp, Dp)
    b2_p = pad2(jnp.asarray(b2).reshape(1, D).astype(jnp.float32), 1, Dp)
    return w1_p, b1_p, w2_p, b2_p


def adapter_forward(x, w1_p, b1_p, w2_p, b2_p, *, tm=None, out_dtype=None):
    """
    x : (N, D) activations. Passing bf16 x (and/or out_dtype=bf16) halves the
        streamed HBM bytes; the kernel is bandwidth bound on all generations.
    w1_p, b1_p, w2_p, b2_p : outputs of prepare_adapter_params.
    Returns (N, D) in out_dtype (defaults to x.dtype): x + ReLU(x @ w1 + b1) @ w2 + b2.
    """
    N, D = x.shape
    Dp, Mp = w1_p.shape
    assert w2_p.shape == (Mp, Dp) and b1_p.shape == (1, Mp) and b2_p.shape == (1, Dp)
    assert Dp >= D, "params were prepared for a smaller embed_dim than x"
    out_dtype = jnp.dtype(x.dtype if out_dtype is None else out_dtype)

    # Only the feature dim is ever padded, and only when D is not 128-aligned.
    # The token dim is never padded: the ragged last tile is masked by Pallas.
    pad_d = Dp != D
    x_p = jnp.pad(x, ((0, 0), (0, Dp - D))) if pad_d else x

    xi = jnp.dtype(x.dtype).itemsize
    oi = out_dtype.itemsize
    wi = jnp.dtype(w1_p.dtype).itemsize
    sub = {4: 8, 2: 16, 1: 32}.get(min(xi, oi), 8)   # dtype-native sublane tile

    vmem_bytes, num_tc, is_v7 = _tpu_caps()
    # Generation-aware VMEM ceiling: v7x has 64 MiB per TC, v5e/v6e have 128 MiB.
    ceiling = 56 * _MiB if is_v7 else 100 * _MiB
    vmem_limit = max(min(ceiling, vmem_bytes), min(32 * _MiB, vmem_bytes))
    budget = vmem_limit - 6 * _MiB                   # slack for Mosaic internal scratch

    def _need(tm_, x_depth, w_depth):
        stream = tm_ * Dp * (x_depth * xi + 2 * oi)           # x in-flight + out double buffer
        temps = tm_ * ((4 + wi) * Mp + (8 + wi) * Dp)         # f32 h/y/x + mxu-dtype casts
        weights = w_depth * wi * 2 * Dp * Mp                  # resident W1 + W2
        biases = w_depth * 4 * 8 * (Mp + Dp)                  # (1,*) tiles pad to 8 sublanes
        return stream + temps + weights + biases

    def _fit_tm(x_depth, w_depth):
        cap = 1024 if tm is None else max(sub, _round_up(int(tm), sub))
        fixed = _need(0, x_depth, w_depth)
        per_tok = _need(1, x_depth, w_depth) - fixed
        t = (budget - fixed) // max(per_tok, 1)
        t = (int(t) // sub) * sub
        # TODO(synk): if the resident weights alone overflow `budget` (very large D*M,
        # especially on v7x), add a K-tiled "arbitrary" grid axis over D with a
        # pl.when-initialized f32 accumulator instead of collapsing tm to `sub`.
        return max(sub, min(t, cap))

    def _cap_to_tokens(t):
        if num_tc >= 2:
            # Dual TensorCore (v7x): keep >= 2 grid steps, prefer an even count.
            t = min(t, max(sub, _round_up(_cdiv(N, 2), sub)))
            steps = _cdiv(N, t)
            if steps > 1 and steps % 2 == 1:
                alt = max(sub, _round_up(_cdiv(N, steps + 1), sub))
                if _cdiv(N, alt) % 2 == 0:
                    t = min(t, alt)
        else:
            # Single TensorCore (v5e/v6e): one tile when N fits the VMEM budget.
            t = min(t, max(sub, _round_up(N, sub)))
        return t

    def _call(tm_, x_mode, w_mode):
        def spec(shape, imap, mode):
            if mode is None:
                return pl.BlockSpec(shape, imap)
            return pl.BlockSpec(shape, imap, pipeline_mode=mode)

        return pl.pallas_call(
            adapter_kernel,
            out_shape=jax.ShapeDtypeStruct((N, Dp), out_dtype),
            grid_spec=pl.GridSpec(
                grid=(_cdiv(N, tm_),),
                in_specs=[
                    spec((tm_, Dp), lambda i: (i, 0), x_mode),   # x tile (streamed)
                    spec((Dp, Mp), lambda i: (0, 0), w_mode),    # W1 (resident)
                    spec((1, Mp), lambda i: (0, 0), w_mode),     # b1 (resident)
                    spec((Mp, Dp), lambda i: (0, 0), w_mode),    # W2 (resident)
                    spec((1, Dp), lambda i: (0, 0), w_mode),     # b2 (resident)
                ],
                out_specs=pl.BlockSpec((tm_, Dp), lambda i: (i, 0)),
            ),
            compiler_params=pltpu.CompilerParams(
                dimension_semantics=("parallel",),
                vmem_limit_bytes=int(vmem_limit),
            ),
        )(x_p, w1_p, b1_p, w2_p, b2_p)

    out_p = None
    if hasattr(pl, "Buffered"):
        # Primary: constant-index weights/biases single-buffered (halves their VMEM,
        # which matters on v7x); on v5e/v6e deepen the x pipeline to 3 when it fits.
        tm_eff = _cap_to_tokens(_fit_tm(x_depth=2, w_depth=1))
        x_depth = 3 if (not is_v7 and _cdiv(N, tm_eff) >= 3
                        and _need(tm_eff, 3, 1) <= budget) else 2
        try:
            out_p = _call(tm_eff,
                          pl.Buffered(x_depth) if x_depth != 2 else None,
                          pl.Buffered(1))
        except (TypeError, ValueError, NotImplementedError):
            # Narrow: only API/signature-level rejection of pipeline_mode / Buffered
            # lands here.  Genuine lowering / VMEM errors propagate instead of being
            # masked and retried with a larger footprint.
            out_p = None
    if out_p is None:
        # Fallback (no pipeline_mode): everything is double-buffered, so re-derive
        # the tile size for the ~2x weight footprint rather than reusing tm_eff.
        tm_fb = _cap_to_tokens(_fit_tm(x_depth=2, w_depth=2))
        out_p = _call(tm_fb, None, None)

    # Column slice only in the (atypical) non-128-aligned-D case.
    return out_p[:, :D] if pad_d else out_p


if __name__ == "__main__":
    # Small shapes consistent with the module: batch=2, seq=8, embed_dim=32, mid=16.
    B, S, D, MID = 2, 8, 32, 16

    key = jax.random.PRNGKey(0)
    kx, kw1, kb1, kw2, kb2 = jax.random.split(key, 5)

    x = jax.random.normal(kx, (B, S, D), dtype=jnp.float32)
    # Deterministic synthetic parameters (shapes match the two nn.Linear layers).
    w1 = jax.random.normal(kw1, (D, MID), dtype=jnp.float32) * 0.05   # Linear(embed_dim, mid)
    b1 = jax.random.normal(kb1, (MID,), dtype=jnp.float32) * 0.05
    w2 = jax.random.normal(kw2, (MID, D), dtype=jnp.float32) * 0.05   # Linear(mid, embed_dim)
    b2 = jax.random.normal(kb2, (D,), dtype=jnp.float32) * 0.05

    # Cast/pad parameters once; reuse them for every forward call.
    params = prepare_adapter_params(w1, b1, w2, b2)

    x2d = x.reshape(B * S, D)
    out = adapter_forward(x2d, *params).reshape(B, S, D)
    jax.block_until_ready(out)

    # Reference 1: identical numerics to the kernel (bf16 MXU operands, f32 accum).
    xb, w1b, w2b = (a.astype(jnp.bfloat16) for a in (x2d, w1, w2))
    h = jnp.maximum(jnp.dot(xb, w1b, preferred_element_type=jnp.float32) + b1, 0.0)
    y = jnp.dot(h.astype(jnp.bfloat16), w2b, preferred_element_type=jnp.float32) + b2
    ref_bf16 = (x2d + y).reshape(B, S, D)
    assert jnp.allclose(out, ref_bf16, atol=1e-4, rtol=1e-4), "mismatch vs bf16-matched reference"

    # Reference 2: full-f32 module semantics (looser tol for the bf16 MXU operands;
    # use prepare_adapter_params(..., mxu_dtype=jnp.float32) for exact f32 compute).
    ref_f32 = x + (jnp.maximum(x @ w1 + b1, 0.0) @ w2 + b2)
    assert jnp.allclose(out, ref_f32, atol=3e-2, rtol=3e-2), "mismatch vs f32 reference"

    print("KERNEL_OK")
</pallas_src>

<mosaic_0001>
module attributes {stable_mosaic.version = 11 : i64} {
  func.func @adapter_kernel(%arg0: i32, %arg1: memref<16x128xf32, #tpu.memory_space<vmem>>, %arg2: memref<128x128xbf16, #tpu.memory_space<vmem>>, %arg3: memref<1x128xf32, #tpu.memory_space<vmem>>, %arg4: memref<128x128xbf16, #tpu.memory_space<vmem>>, %arg5: memref<1x128xf32, #tpu.memory_space<vmem>>, %arg6: memref<16x128xf32, #tpu.memory_space<vmem>>) attributes {dimension_semantics = [#tpu.dimension_semantics<parallel>], iteration_bounds = array<i64: 1>, scalar_prefetch = 0 : i64, scratch_operands = 0 : i64, tpu.core_type = #tpu.core_type<tc>, window_params = [{transform_indices = @transform_0, window_bounds = array<i64: 16, 128>}, {pipeline_mode = #tpu.pipeline_mode<synchronous>, transform_indices = @transform_1, window_bounds = array<i64: 128, 128>}, {pipeline_mode = #tpu.pipeline_mode<synchronous>, transform_indices = @transform_2, window_bounds = array<i64: 1, 128>}, {pipeline_mode = #tpu.pipeline_mode<synchronous>, transform_indices = @transform_3, window_bounds = array<i64: 128, 128>}, {pipeline_mode = #tpu.pipeline_mode<synchronous>, transform_indices = @transform_4, window_bounds = array<i64: 1, 128>}, {transform_indices = @transform_5, window_bounds = array<i64: 16, 128>}]} {
    %c0 = arith.constant 0 : index
    %c0_0 = arith.constant 0 : index
    %0 = vector.load %arg1[%c0, %c0_0] : memref<16x128xf32, #tpu.memory_space<vmem>>, vector<16x128xf32>
    %1 = arith.truncf %0 : vector<16x128xf32> to vector<16x128xbf16>
    %c0_1 = arith.constant 0 : index
    %c0_2 = arith.constant 0 : index
    %2 = vector.load %arg2[%c0_1, %c0_2] : memref<128x128xbf16, #tpu.memory_space<vmem>>, vector<128x128xbf16>
    %cst = arith.constant dense<0.000000e+00> : vector<16x128xf32>
    %3 = tpu.matmul %1, %2, %cst {dimension_numbers = #tpu.dot_dimension_numbers<[1], [0], [0], [1], [0, 0, 1, 1], [], []>} : vector<16x128xbf16>, vector<128x128xbf16>, vector<16x128xf32> -> vector<16x128xf32>
    %c0_3 = arith.constant 0 : index
    %c0_4 = arith.constant 0 : index
    %4 = vector.load %arg3[%c0_3, %c0_4] : memref<1x128xf32, #tpu.memory_space<vmem>>, vector<1x128xf32>
    %5 = vector.broadcast %4 : vector<1x128xf32> to vector<16x128xf32>
    %6 = arith.addf %3, %5 : vector<16x128xf32>
    %cst_5 = arith.constant 0.000000e+00 : f32
    %7 = vector.broadcast %cst_5 : f32 to vector<16x128xf32>
    %8 = arith.maximumf %6, %7 : vector<16x128xf32>
    %9 = arith.truncf %8 : vector<16x128xf32> to vector<16x128xbf16>
    %c0_6 = arith.constant 0 : index
    %c0_7 = arith.constant 0 : index
    %10 = vector.load %arg4[%c0_6, %c0_7] : memref<128x128xbf16, #tpu.memory_space<vmem>>, vector<128x128xbf16>
    %cst_8 = arith.constant dense<0.000000e+00> : vector<16x128xf32>
    %11 = tpu.matmul %9, %10, %cst_8 {dimension_numbers = #tpu.dot_dimension_numbers<[1], [0], [0], [1], [0, 0, 1, 1], [], []>} : vector<16x128xbf16>, vector<128x128xbf16>, vector<16x128xf32> -> vector<16x128xf32>
    %c0_9 = arith.constant 0 : index
    %c0_10 = arith.constant 0 : index
    %12 = vector.load %arg5[%c0_9, %c0_10] : memref<1x128xf32, #tpu.memory_space<vmem>>, vector<1x128xf32>
    %13 = vector.broadcast %12 : vector<1x128xf32> to vector<16x128xf32>
    %14 = arith.addf %11, %13 : vector<16x128xf32>
    %15 = arith.addf %0, %14 : vector<16x128xf32>
    %c0_11 = arith.constant 0 : index
    %c0_12 = arith.constant 0 : index
    %16 = vector.load %arg6[%c0_11, %c0_12] : memref<16x128xf32, #tpu.memory_space<vmem>>, vector<16x128xf32>
    tpu.vector_store %arg6[%c0_11, %c0_12], %15 {strides = array<i32>} : memref<16x128xf32, #tpu.memory_space<vmem>>, vector<16x128xf32>,
    return
  }
  func.func @transform_0(%arg0: i32) -> (i32, i32) {
    %c0_i32 = arith.constant 0 : i32
    %c0_i32_0 = arith.constant 0 : i32
    return %arg0, %c0_i32 : i32, i32
  }
  func.func @transform_1(%arg0: i32) -> (i32, i32) {
    %c0_i32 = arith.constant 0 : i32
    %c0_i32_0 = arith.constant 0 : i32
    %c0_i32_1 = arith.constant 0 : i32
    return %c0_i32, %c0_i32_0 : i32, i32
  }
  func.func @transform_2(%arg0: i32) -> (i32, i32) {
    %c0_i32 = arith.constant 0 : i32
    %c0_i32_0 = arith.constant 0 : i32
    %c0_i32_1 = arith.constant 0 : i32
    return %c0_i32, %c0_i32_0 : i32, i32
  }
  func.func @transform_3(%arg0: i32) -> (i32, i32) {
    %c0_i32 = arith.constant 0 : i32
    %c0_i32_0 = arith.constant 0 : i32
    %c0_i32_1 = arith.constant 0 : i32
    return %c0_i32, %c0_i32_0 : i32, i32
  }
  func.func @transform_4(%arg0: i32) -> (i32, i32) {
    %c0_i32 = arith.constant 0 : i32
    %c0_i32_0 = arith.constant 0 : i32
    %c0_i32_1 = arith.constant 0 : i32
    return %c0_i32, %c0_i32_0 : i32, i32
  }
  func.func @transform_5(%arg0: i32) -> (i32, i32) {
    %c0_i32 = arith.constant 0 : i32
    %c0_i32_0 = arith.constant 0 : i32
    return %arg0, %c0_i32 : i32, i32
  }
}

</mosaic_0001>

<llo_original>
// kernel: tpu_custom_call.1
$region0: #{tpu_custom_call.1}
  #allocation0 [shape = 'u32[]', space=smem, size = 0x4, offset = 0x4, fixed_abs, tag = 'smem constant byte address 0x4 - core index']
  #allocation1 [shape = 'u32[144,128]{1,0:T(1,128)}', space=vmem, size = 0x12000, scoped, tag = 'internal scratch']
  %s0 = inlined_call_operand.hbm [shape: f32[16,128], index: 0, kind: input, shape index: {}]
  %s1 = inlined_call_operand.hbm [shape: bf16[128,128], index: 1, kind: input, shape index: {}]
  %s2 = inlined_call_operand.hbm [shape: f32[1,128], index: 2, kind: input, shape index: {}]
  %s3 = inlined_call_operand.hbm [shape: bf16[128,128], index: 3, kind: input, shape index: {}]
  %s4 = inlined_call_operand.hbm [shape: f32[1,128], index: 4, kind: input, shape index: {}]
  %s5 = inlined_call_operand.hbm [shape: f32[16,128], index: 5, kind: output, shape index: {}]
  %s6 = sld [smem:[#allocation0]]
  $region50: #{tpu_custom_call.1} parent=0
    _
  %s8 = ssub.s32 1, %s6
  %s9 = scalar_select 0, %s8, %s6
  $region1: #{tpu_custom_call.1} parent=0
    #allocation2 [shape = 'u8[8192]{0}', space=vmem, size = 0x2000, scoped, tag = 'input window, operand 0, single buffered']
    #allocation3 [shape = 's32[1]{0}', space=sflag, size = 0x4, scoped, tag = 'scoped memory for tpu_custom_call.1']
    #allocation4 [shape = 's32[1]{0}', space=sflag, size = 0x4, scoped, tag = 'scoped memory for tpu_custom_call.1']
    #allocation5 [shape = 'u8[32768]{0}', space=vmem, size = 0x8000, scoped, tag = 'input window, operand 1, single buffered']
    #allocation6 [shape = 's32[1]{0}', space=sflag, size = 0x4, scoped, tag = 'scoped memory for tpu_custom_call.1']
    #allocation7 [shape = 'u8[512]{0}', space=vmem, size = 0x400, scoped, tag = 'input window, operand 2, single buffered']
    #allocation8 [shape = 'u8[32768]{0}', space=vmem, size = 0x8000, scoped, tag = 'input window, operand 3, single buffered']
    #allocation9 [shape = 's32[1]{0}', space=sflag, size = 0x4, scoped, tag = 'scoped memory for tpu_custom_call.1']
    #allocation10 [shape = 'u8[512]{0}', space=vmem, size = 0x400, scoped, tag = 'input window, operand 4, single buffered']
    #allocation11 [shape = 'u8[8192]{0}', space=vmem, size = 0x2000, scoped, tag = 'output window, operand 0, single buffered']
    %10 = vsyncpa [#allocation3], 0
    %11 = vsyncpa [#allocation6], 0
    %12 = vsyncpa [#allocation9], 0
    %13 = vsyncpa [#allocation4], 0
    // Predicated region
    $region2: #{tpu_custom_call.1} parent=1 // pred_check
      _
    $region3: #{tpu_custom_call.1} parent=1 // pred_check_branch
      %15 = sbr.rel (0) target = $region5
    $region4: #{tpu_custom_call.1} parent=1 // pred_region
      %s17 = ssub.s32 256, 256
      %18 = vsyncadd [#allocation3], %s17
      %s19 = sshll.u32 [#allocation2], 4
      %s20 = int_to_ptr.vmem [resolvable:$true] %s19
      %25 = dma.hbm_to_vmem [thread:$0]  %s0, 256, %s20, [#allocation3], 128, 128, 8
    $region5: #{tpu_custom_call.1} parent=1 // pred_fallthru
      _
    // Predicated region
    $region6: #{tpu_custom_call.1} parent=1 // pred_check
      _
    $region7: #{tpu_custom_call.1} parent=1 // pred_check_branch
      %27 = sbr.rel (0) target = $region9
    $region8: #{tpu_custom_call.1} parent=1 // pred_region
      %s29 = ssub.s32 1024, 1024
      %30 = vsyncadd [#allocation6], %s29
      %s31 = sshll.u32 [#allocation5], 4
      %s32 = int_to_ptr.vmem [resolvable:$true] %s31
      %37 = dma.hbm_to_vmem [thread:$0]  %s1, 1024, %s32, [#allocation6], 64, 64, 4
    $region9: #{tpu_custom_call.1} parent=1 // pred_fallthru
      _
    // Predicated region
    $region10: #{tpu_custom_call.1} parent=1 // pred_check
      _
    $region11: #{tpu_custom_call.1} parent=1 // pred_check_branch
      %39 = sbr.rel (0) target = $region13
    $region12: #{tpu_custom_call.1} parent=1 // pred_region
      %s41 = ssub.s32 16, 16
      %42 = vsyncadd [#allocation6], %s41
      %s44 = sshll.u32 [#allocation7], 4
      %s45 = int_to_ptr.vmem [resolvable:$true] %s44
      %47 = dma.hbm_to_vmem [thread:$0]  %s2, 16, %s45, [#allocation6]
    $region13: #{tpu_custom_call.1} parent=1 // pred_fallthru
      _
    // Predicated region
    $region14: #{tpu_custom_call.1} parent=1 // pred_check
      _
    $region15: #{tpu_custom_call.1} parent=1 // pred_check_branch
      %49 = sbr.rel (0) target = $region17
    $region16: #{tpu_custom_call.1} parent=1 // pred_region
      %s51 = ssub.s32 1024, 1024
      %52 = vsyncadd [#allocation9], %s51
      %s53 = sshll.u32 [#allocation8], 4
      %s54 = int_to_ptr.vmem [resolvable:$true] %s53
      %59 = dma.hbm_to_vmem [thread:$0]  %s3, 1024, %s54, [#allocation9], 64, 64, 4
    $region17: #{tpu_custom_call.1} parent=1 // pred_fallthru
      _
    // Predicated region
    $region18: #{tpu_custom_call.1} parent=1 // pred_check
      _
    $region19: #{tpu_custom_call.1} parent=1 // pred_check_branch
      %61 = sbr.rel (0) target = $region21
    $region20: #{tpu_custom_call.1} parent=1 // pred_region
      %s63 = ssub.s32 16, 16
      %64 = vsyncadd [#allocation9], %s63
      %s66 = sshll.u32 [#allocation10], 4
      %s67 = int_to_ptr.vmem [resolvable:$true] %s66
      %69 = dma.hbm_to_vmem [thread:$0]  %s4, 16, %s67, [#allocation9]
    $region21: #{tpu_custom_call.1} parent=1 // pred_fallthru
      _
    // Predicated region
    $region22: #{tpu_custom_call.1} parent=1 // pred_check
      _
    $region23: #{tpu_custom_call.1} parent=1 // pred_check_branch
      %71 = sbr.rel (0) target = $region25
    $region24: #{tpu_custom_call.1} parent=1 // pred_region
      %72 = dma.done [#allocation3], 256
    $region25: #{tpu_custom_call.1} parent=1 // pred_fallthru
      _
    // Predicated region
    $region26: #{tpu_custom_call.1} parent=1 // pred_check
      _
    $region27: #{tpu_custom_call.1} parent=1 // pred_check_branch
      %74 = sbr.rel (0) target = $region29
    $region28: #{tpu_custom_call.1} parent=1 // pred_region
      %75 = dma.done [#allocation6], 1024
    $region29: #{tpu_custom_call.1} parent=1 // pred_fallthru
      _
    // Predicated region
    $region30: #{tpu_custom_call.1} parent=1 // pred_check
      _
    $region31: #{tpu_custom_call.1} parent=1 // pred_check_branch
      %77 = sbr.rel (0) target = $region33
    $region32: #{tpu_custom_call.1} parent=1 // pred_region
      %78 = dma.done [#allocation6], 16
    $region33: #{tpu_custom_call.1} parent=1 // pred_fallthru
      _
    // Predicated region
    $region34: #{tpu_custom_call.1} parent=1 // pred_check
      _
    $region35: #{tpu_custom_call.1} parent=1 // pred_check_branch
      %80 = sbr.rel (0) target = $region37
    $region36: #{tpu_custom_call.1} parent=1 // pred_region
      %81 = dma.done [#allocation9], 1024
    $region37: #{tpu_custom_call.1} parent=1 // pred_fallthru
      _
    // Predicated region
    $region38: #{tpu_custom_call.1} parent=1 // pred_check
      _
    $region39: #{tpu_custom_call.1} parent=1 // pred_check_branch
      %83 = sbr.rel (0) target = $region41
    $region40: #{tpu_custom_call.1} parent=1 // pred_region
      %84 = dma.done [#allocation9], 16
    $region41: #{tpu_custom_call.1} parent=1 // pred_fallthru
      _
    %v86 = vld [vmem:[#allocation2] sm:$0xff]
    %v87 = vld [vmem:[#allocation2 + $0x8] sm:$0xff]
    %v88 = vpack.c.bf16 %v87, %v86
    %v89 = vld [vmem:[#allocation5] sm:$0xf]
    %v90 = vld [vmem:[#allocation5 + $0x4] sm:$0xf]
    %v91 = vld [vmem:[#allocation5 + $0x8] sm:$0xf]
    %v92 = vld [vmem:[#allocation5 + $0xc] sm:$0xf]
    %v93 = vld [vmem:[#allocation5 + $0x10] sm:$0xf]
    %v94 = vld [vmem:[#allocation5 + $0x14] sm:$0xf]
    %v95 = vld [vmem:[#allocation5 + $0x18] sm:$0xf]
    %v96 = vld [vmem:[#allocation5 + $0x1c] sm:$0xf]
    %v97 = vld [vmem:[#allocation5 + $0x20] sm:$0xf]
    %v98 = vld [vmem:[#allocation5 + $0x24] sm:$0xf]
    %v99 = vld [vmem:[#allocation5 + $0x28] sm:$0xf]
    %v100 = vld [vmem:[#allocation5 + $0x2c] sm:$0xf]
    %v101 = vld [vmem:[#allocation5 + $0x30] sm:$0xf]
    %v102 = vld [vmem:[#allocation5 + $0x34] sm:$0xf]
    %v103 = vld [vmem:[#allocation5 + $0x38] sm:$0xf]
    %v104 = vld [vmem:[#allocation5 + $0x3c] sm:$0xf]
    %v105 = vld [vmem:[#allocation7] sm:$0x1]
    %v107 = vlaneseq
    %v108 = vshrl.u32 %v107, 7
    %v109 = vsub.s32 0, %v108
    %v110 = vrot.slane %v105, %v109
    %v128 = vunpack.c.l.b16 %v89
    %v129 = vunpack.c.l.b16 %v90
    %v130 = vunpack.c.l.b16 %v91
    %v131 = vunpack.c.l.b16 %v92
    %v132 = vunpack.c.l.b16 %v93
    %v133 = vunpack.c.l.b16 %v94
    %v134 = vunpack.c.l.b16 %v95
    %v135 = vunpack.c.l.b16 %v96
    %v136 = vunpack.c.l.b16 %v97
    %v137 = vunpack.c.l.b16 %v98
    %v138 = vunpack.c.l.b16 %v99
    %v139 = vunpack.c.l.b16 %v100
    %v140 = vunpack.c.l.b16 %v101
    %v141 = vunpack.c.l.b16 %v102
    %v142 = vunpack.c.l.b16 %v103
    %v143 = vunpack.c.l.b16 %v104
    %v144 = vpack.c.b16 %v129, %v128
    %v145 = vpack.c.b16 %v131, %v130
    %v146 = vpack.c.b16 %v133, %v132
    %v147 = vpack.c.b16 %v135, %v134
    %v148 = vpack.c.b16 %v137, %v136
    %v149 = vpack.c.b16 %v139, %v138
    %v150 = vpack.c.b16 %v141, %v140
    %v151 = vpack.c.b16 %v143, %v142
    %160 = vmatprep.subr.bf16.mxu0 0
    %161 = vmatpush1.bf16.msra.mxu0 %v144
    %162 = vmatprep.subr.bf16.mxu0 0
    %163 = vmatpush1.bf16.msra.mxu0 %v145
    %164 = vmatprep.subr.bf16.mxu0 0
    %165 = vmatpush1.bf16.msra.mxu0 %v146
    %166 = vmatprep.subr.bf16.mxu0 0
    %167 = vmatpush1.bf16.msra.mxu0 %v147
    %168 = vmatprep.subr.bf16.mxu0 0
    %169 = vmatpush1.bf16.msra.mxu0 %v148
    %170 = vmatprep.subr.bf16.mxu0 0
    %171 = vmatpush1.bf16.msra.mxu0 %v149
    %172 = vmatprep.subr.bf16.mxu0 0
    %173 = vmatpush1.bf16.msra.mxu0 %v150
    %174 = vmatprep.subr.bf16.mxu0 0
    %175 = vmatpush1.bf16.msra.mxu0 %v151
    %176 = vmatprep.subr.bf16.mxu0 0
    %177 = vmatpush1.bf16.msra.mxu0 0
    %178 = vmatprep.subr.bf16.mxu0 0
    %179 = vmatpush1.bf16.msra.mxu0 0
    %180 = vmatprep.subr.bf16.mxu0 0
    %181 = vmatpush1.bf16.msra.mxu0 0
    %182 = vmatprep.subr.bf16.mxu0 0
    %183 = vmatpush1.bf16.msra.mxu0 0
    %184 = vmatprep.subr.bf16.mxu0 0
    %185 = vmatpush1.bf16.msra.mxu0 0
    %186 = vmatprep.subr.bf16.mxu0 0
    %187 = vmatpush1.bf16.msra.mxu0 0
    %188 = vmatprep.subr.bf16.mxu0 0
    %189 = vmatpush1.bf16.msra.mxu0 0
    %190 = vmatprep.subr.bf16.mxu0 0
    %191 = vmatpush1.bf16.msra.mxu0 0
    %192 = vmatprep.mubr.bf16.mxu0 0
    %193 = vmatmul.mubr.bf16.gmra.mrb[0].mxu0 %v88
    %v194 = vpop.f32.mrb[0].mxu0
    %v195 = vadd.f32 %v110, %v194
    %v196 = vpop.f32.mrb[0].mxu0
    %v197 = vpop.f32.mrb[0].mxu0
    %v198 = vadd.f32 %v110, %v197
    %v199 = vpop.f32.mrb[0].mxu0
    %200 = vdwg.mxu0
    %v201 = vmax.f32 %v195, 0.0
    %v202 = vmax.f32 %v198, 0.0
    %v203 = vpack.c.bf16 %v202, %v201
    %v204 = vld [vmem:[#allocation8] sm:$0xf]
    %v205 = vld [vmem:[#allocation8 + $0x4] sm:$0xf]
    %v206 = vld [vmem:[#allocation8 + $0x8] sm:$0xf]
    %v207 = vld [vmem:[#allocation8 + $0xc] sm:$0xf]
    %v208 = vld [vmem:[#allocation8 + $0x10] sm:$0xf]
    %v209 = vld [vmem:[#allocation8 + $0x14] sm:$0xf]
    %v210 = vld [vmem:[#allocation8 + $0x18] sm:$0xf]
    %v211 = vld [vmem:[#allocation8 + $0x1c] sm:$0xf]
    %v212 = vld [vmem:[#allocation8 + $0x20] sm:$0xf]
    %v213 = vld [vmem:[#allocation8 + $0x24] sm:$0xf]
    %v214 = vld [vmem:[#allocation8 + $0x28] sm:$0xf]
    %v215 = vld [vmem:[#allocation8 + $0x2c] sm:$0xf]
    %v216 = vld [vmem:[#allocation8 + $0x30] sm:$0xf]
    %v217 = vld [vmem:[#allocation8 + $0x34] sm:$0xf]
    %v218 = vld [vmem:[#allocation8 + $0x38] sm:$0xf]
    %v219 = vld [vmem:[#allocation8 + $0x3c] sm:$0xf]
    %v220 = vld [vmem:[#allocation10] sm:$0x1]
    %v222 = vlaneseq
    %v223 = vshrl.u32 %v222, 7
    %v224 = vsub.s32 0, %v223
    %v225 = vrot.slane %v220, %v224
    %v243 = vunpack.c.l.b16 %v204
    %v244 = vunpack.c.l.b16 %v205
    %v245 = vunpack.c.l.b16 %v206
    %v246 = vunpack.c.l.b16 %v207
    %v247 = vunpack.c.l.b16 %v208
    %v248 = vunpack.c.l.b16 %v209
    %v249 = vunpack.c.l.b16 %v210
    %v250 = vunpack.c.l.b16 %v211
    %v251 = vunpack.c.l.b16 %v212
    %v252 = vunpack.c.l.b16 %v213
    %v253 = vunpack.c.l.b16 %v214
    %v254 = vunpack.c.l.b16 %v215
    %v255 = vunpack.c.l.b16 %v216
    %v256 = vunpack.c.l.b16 %v217
    %v257 = vunpack.c.l.b16 %v218
    %v258 = vunpack.c.l.b16 %v219
    %v259 = vpack.c.b16 %v244, %v243
    %v260 = vpack.c.b16 %v246, %v245
    %v261 = vpack.c.b16 %v248, %v247
    %v262 = vpack.c.b16 %v250, %v249
    %v263 = vpack.c.b16 %v252, %v251
    %v264 = vpack.c.b16 %v254, %v253
    %v265 = vpack.c.b16 %v256, %v255
    %v266 = vpack.c.b16 %v258, %v257
    %275 = vmatprep.subr.bf16.mxu0 0
    %276 = vmatpush1.bf16.msra.mxu0 %v259
    %277 = vmatprep.subr.bf16.mxu0 0
    %278 = vmatpush1.bf16.msra.mxu0 %v260
    %279 = vmatprep.subr.bf16.mxu0 0
    %280 = vmatpush1.bf16.msra.mxu0 %v261
    %281 = vmatprep.subr.bf16.mxu0 0
    %282 = vmatpush1.bf16.msra.mxu0 %v262
    %283 = vmatprep.subr.bf16.mxu0 0
    %284 = vmatpush1.bf16.msra.mxu0 %v263
    %285 = vmatprep.subr.bf16.mxu0 0
    %286 = vmatpush1.bf16.msra.mxu0 %v264
    %287 = vmatprep.subr.bf16.mxu0 0
    %288 = vmatpush1.bf16.msra.mxu0 %v265
    %289 = vmatprep.subr.bf16.mxu0 0
    %290 = vmatpush1.bf16.msra.mxu0 %v266
    %291 = vmatprep.subr.bf16.mxu0 0
    %292 = vmatpush1.bf16.msra.mxu0 0
    %293 = vmatprep.subr.bf16.mxu0 0
    %294 = vmatpush1.bf16.msra.mxu0 0
    %295 = vmatprep.subr.bf16.mxu0 0
    %296 = vmatpush1.bf16.msra.mxu0 0
    %297 = vmatprep.subr.bf16.mxu0 0
    %298 = vmatpush1.bf16.msra.mxu0 0
    %299 = vmatprep.subr.bf16.mxu0 0
    %300 = vmatpush1.bf16.msra.mxu0 0
    %301 = vmatprep.subr.bf16.mxu0 0
    %302 = vmatpush1.bf16.msra.mxu0 0
    %303 = vmatprep.subr.bf16.mxu0 0
    %304 = vmatpush1.bf16.msra.mxu0 0
    %305 = vmatprep.subr.bf16.mxu0 0
    %306 = vmatpush1.bf16.msra.mxu0 0
    %307 = vmatprep.mubr.bf16.mxu0 0
    %308 = vmatmul.mubr.bf16.gmra.mrb[0].mxu0 %v203
    %v309 = vpop.f32.mrb[0].mxu0
    %v310 = vadd.f32 %v225, %v309
    %v311 = vpop.f32.mrb[0].mxu0
    %v312 = vpop.f32.mrb[0].mxu0
    %v313 = vadd.f32 %v225, %v312
    %v314 = vpop.f32.mrb[0].mxu0
    %315 = vdwg.mxu0
    %v316 = vadd.f32 %v86, %v310
    %v317 = vadd.f32 %v87, %v313
    %318 = vst [vmem:[#allocation11] sm:$0xff] %v316
    %319 = vst [vmem:[#allocation11 + $0x8] sm:$0xff] %v317
    // Predicated region
    $region42: #{tpu_custom_call.1} parent=1 // pred_check
      _
    $region43: #{tpu_custom_call.1} parent=1 // pred_check_branch
      %321 = sbr.rel (0) target = $region45
    $region44: #{tpu_custom_call.1} parent=1 // pred_region
      %s323 = ssub.s32 256, 256
      %324 = vsyncadd [#allocation4], %s323
      %s325 = sshll.u32 [#allocation11], 4
      %s326 = int_to_ptr.vmem [resolvable:$true] %s325
      %331 = dma.vmem_to_hbm [thread:$0]  %s326, 256, %s5, [#allocation4], 128, 128, 8
    $region45: #{tpu_custom_call.1} parent=1 // pred_fallthru
      _
    // Predicated region
    $region46: #{tpu_custom_call.1} parent=1 // pred_check
      _
    $region47: #{tpu_custom_call.1} parent=1 // pred_check_branch
      %333 = sbr.rel (0) target = $region49
    $region48: #{tpu_custom_call.1} parent=1 // pred_region
      %334 = dma.done [#allocation4], 256
    $region49: #{tpu_custom_call.1} parent=1 // pred_fallthru
      _
    %335 = vsyncpa [#allocation3], 1
    %336 = vsyncpa [#allocation6], 1
    %337 = vsyncpa [#allocation9], 1
    %338 = vsyncpa [#allocation4], 1

</llo_original>
